<compile_context>
chip_gen: v7x
topology: tpu7x:2x2x1
jax: 0.10.0
libtpu: 0.0.40
codegen_flags: <defaults>
</compile_context>

<pallas_src>
import functools
import math

import jax
import jax.numpy as jnp
import numpy as np
from jax.experimental import pallas as pl
from jax.experimental.pallas import tpu as pltpu

BN_EPS = 1e-5
LRELU_SLOPE = 0.2


def _choose_bb(batch, frame_l, rows_target=512):
    """Batch elements per grid step.

    One big step: amortize the ~0.35us per-grid-step overhead by targeting
    ~512 matmul M rows.  No ">= 2 grid steps" clamp -- v5e/v6e have a single
    TensorCore, and on v7x plain dimension_semantics=("parallel",) does not
    shard across the two TCs anyway (use CORE_PARALLEL / pl.core_map if that
    is actually wanted)."""
    return max(1, min(batch, rows_target // max(frame_l, 1)))


def _block_kernel(xc_ref, w1_ref, s1_ref, h1_ref, w2_ref, s2_ref, h2_ref,
                  o_ref, *, K, pad, bb):
    # xc_ref: (bb, L, K*D) bf16   layer-1 im2col (built in the wrapper)
    # w1_ref: (K*D, F)     bf16   conv1 weight, tap-major, im2col-folded
    # s1/h1:  (L, F)       f32    folded BN1 scale / shift (lane-dense)
    # w2_ref: (K*F, F)     bf16   conv2 weight, tap-major, im2col-folded
    # s2/h2:  (L, F)       f32    folded BN2 scale / shift
    # o_ref:  (bb, L, F)
    L = o_ref.shape[1]
    F_ = o_ref.shape[2]
    KD = xc_ref.shape[2]

    # ---- layer 1: single (bb*L, K*D) @ (K*D, F) MXU matmul ----
    y = jnp.dot(xc_ref[...].reshape(bb * L, KD), w1_ref[...],
                preferred_element_type=jnp.float32).reshape(bb, L, F_)
    # BatchNorm1d (eval, folded to per-frame scale/shift) + LeakyReLU, in f32.
    y = y * s1_ref[...] + h1_ref[...]
    y = jnp.where(y >= 0, y, LRELU_SLOPE * y)

    # ---- layer 2: build the K shifted tap copies of y as values (no VMEM
    # scratch round-trip), concat along the lane axis, one matmul ----
    yb = y.astype(jnp.bfloat16)
    taps = []
    for t in range(K):
        d = t - pad                      # frame offset of this tap
        if d == 0:
            yt = yb
        elif d > 0:
            yt = jnp.concatenate(
                [yb[:, d:, :], jnp.zeros((bb, d, F_), jnp.bfloat16)], axis=1)
        else:
            yt = jnp.concatenate(
                [jnp.zeros((bb, -d, F_), jnp.bfloat16), yb[:, :L + d, :]],
                axis=1)
        taps.append(yt)
    y2 = jnp.concatenate(taps, axis=-1).reshape(bb * L, K * F_)

    z = jnp.dot(y2, w2_ref[...],
                preferred_element_type=jnp.float32).reshape(bb, L, F_)
    z = z * s2_ref[...] + h2_ref[...]
    z = jnp.where(z >= 0, z, LRELU_SLOPE * z)

    o_ref[...] = z.astype(o_ref.dtype)


def block_forward(x, params, *, bb=None):
    """x: (B, input_channels, input_dims) -> (B, input_channels, filters)."""
    B, L, D = x.shape
    w1 = params["w1"].astype(jnp.float32)          # (F, D, K)  PyTorch layout
    w2 = params["w2"].astype(jnp.float32)          # (F, F, K)
    F_, _, K = w1.shape
    pad = math.ceil((K - 1) / 2)
    hi = K - 1 - pad

    # Fold eval-mode BatchNorm into lane-dense (L, F) scale/shift tables.
    def fold_bn(g, b, m, v):
        s = (g / jnp.sqrt(v + BN_EPS)).astype(jnp.float32)
        h = (b - m * s).astype(jnp.float32)
        return (jnp.broadcast_to(s[:, None], (L, F_)),
                jnp.broadcast_to(h[:, None], (L, F_)))

    s1, h1 = fold_bn(params["bn1_g"], params["bn1_b"],
                     params["bn1_m"], params["bn1_v"])
    s2, h2 = fold_bn(params["bn2_g"], params["bn2_b"],
                     params["bn2_m"], params["bn2_v"])

    # im2col-folded, tap-major weights; bf16 operands for the MXU
    # (f32 accumulation is kept via preferred_element_type in the kernel).
    w1c = jnp.transpose(w1, (2, 1, 0)).reshape(K * D, F_).astype(jnp.bfloat16)
    w2c = jnp.transpose(w2, (2, 1, 0)).reshape(K * F_, F_).astype(jnp.bfloat16)

    if bb is None:
        bb = _choose_bb(B, L)
    G = pl.cdiv(B, bb)
    Bp = G * bb

    # Layer-1 im2col in the wrapper: pad the frame axis with the conv halo and
    # concat the K shifted windows along the feature axis -> (Bp, L, K*D).
    xp = jnp.pad(x, ((0, Bp - B), (pad, hi), (0, 0)))
    xcol = jnp.concatenate([xp[:, t:t + L, :] for t in range(K)], axis=-1)
    xcol = xcol.astype(jnp.bfloat16)

    kernel = functools.partial(_block_kernel, K=K, pad=pad, bb=bb)
    out = pl.pallas_call(
        kernel,
        out_shape=jax.ShapeDtypeStruct((Bp, L, F_), x.dtype),
        grid=(G,),
        in_specs=[
            pl.BlockSpec((bb, L, K * D), lambda g: (g, 0, 0)),   # x im2col
            pl.BlockSpec((K * D, F_), lambda g: (0, 0)),         # conv1 weight
            pl.BlockSpec((L, F_), lambda g: (0, 0)),             # bn1 scale
            pl.BlockSpec((L, F_), lambda g: (0, 0)),             # bn1 shift
            pl.BlockSpec((K * F_, F_), lambda g: (0, 0)),        # conv2 weight
            pl.BlockSpec((L, F_), lambda g: (0, 0)),             # bn2 scale
            pl.BlockSpec((L, F_), lambda g: (0, 0)),             # bn2 shift
        ],
        out_specs=pl.BlockSpec((bb, L, F_), lambda g: (g, 0, 0)),
        # VMEM footprint at these sizes is a few KiB -- no vmem_limit needed.
        compiler_params=pltpu.CompilerParams(
            dimension_semantics=("parallel",)),
    )(xcol, w1c, s1, h1, w2c, s2, h2)
    return out[:B]


def block_reference(x, p):
    """Pure-JAX f32 reference mirroring the PyTorch forward (eval mode)."""
    def c1d(a, w, g, b, m, v):
        B, C, _ = a.shape
        F_, _, K = w.shape
        pad = math.ceil((K - 1) / 2)
        ap = jnp.pad(a, ((0, 0), (pad, K - 1 - pad), (0, 0)))
        y = jnp.zeros((B, C, F_), jnp.float32)
        for t in range(K):
            y = y + jnp.einsum("bld,fd->blf", ap[:, t:t + C, :], w[:, :, t])
        y = ((y - m[None, :, None]) / jnp.sqrt(v[None, :, None] + BN_EPS)
             * g[None, :, None] + b[None, :, None])
        return jnp.where(y >= 0, y, LRELU_SLOPE * y)

    y = c1d(x, p["w1"], p["bn1_g"], p["bn1_b"], p["bn1_m"], p["bn1_v"])
    return c1d(y, p["w2"], p["bn2_g"], p["bn2_b"], p["bn2_m"], p["bn2_v"])


if __name__ == "__main__":
    # batch=2, input_channels=16, input_dims=8, filters=32, kernel=3
    B, C, D, F_, K = 2, 16, 8, 32, 3
    key = jax.random.PRNGKey(0)
    ks = jax.random.split(key, 12)
    params = {
        "w1":    jax.random.normal(ks[0], (F_, D, K), jnp.float32) / np.sqrt(D * K),
        "bn1_g": jax.random.normal(ks[1], (C,), jnp.float32) * 0.1 + 1.0,
        "bn1_b": jax.random.normal(ks[2], (C,), jnp.float32) * 0.1,
        "bn1_m": jax.random.normal(ks[3], (C,), jnp.float32) * 0.1,
        "bn1_v": jnp.abs(jax.random.normal(ks[4], (C,), jnp.float32)) * 0.2 + 0.8,
        "w2":    jax.random.normal(ks[5], (F_, F_, K), jnp.float32) / np.sqrt(F_ * K),
        "bn2_g": jax.random.normal(ks[6], (C,), jnp.float32) * 0.1 + 1.0,
        "bn2_b": jax.random.normal(ks[7], (C,), jnp.float32) * 0.1,
        "bn2_m": jax.random.normal(ks[8], (C,), jnp.float32) * 0.1,
        "bn2_v": jnp.abs(jax.random.normal(ks[9], (C,), jnp.float32)) * 0.2 + 0.8,
    }
    x = jax.random.normal(ks[10], (B, C, D), jnp.float32)

    out = jax.jit(block_forward)(x, params)
    out = jax.block_until_ready(out)
    assert out.shape == (B, C, F_), out.shape

    ref = block_reference(x, params)
    # bf16 MXU operands (f32 accumulation): tolerance loosened accordingly.
    np.testing.assert_allclose(np.asarray(out), np.asarray(ref),
                               rtol=3e-2, atol=3e-2)
    print("KERNEL_OK")
</pallas_src>

<mosaic_0001>
module attributes {stable_mosaic.version = 11 : i64} {
  func.func @_block_kernel(%arg0: i32, %arg1: memref<2x16x24xbf16, #tpu.memory_space<vmem>>, %arg2: memref<24x32xbf16, #tpu.memory_space<vmem>>, %arg3: memref<16x32xf32, #tpu.memory_space<vmem>>, %arg4: memref<16x32xf32, #tpu.memory_space<vmem>>, %arg5: memref<96x32xbf16, #tpu.memory_space<vmem>>, %arg6: memref<16x32xf32, #tpu.memory_space<vmem>>, %arg7: memref<16x32xf32, #tpu.memory_space<vmem>>, %arg8: memref<2x16x32xf32, #tpu.memory_space<vmem>>) attributes {dimension_semantics = [#tpu.dimension_semantics<parallel>], iteration_bounds = array<i64: 1>, scalar_prefetch = 0 : i64, scratch_operands = 0 : i64, tpu.core_type = #tpu.core_type<tc>, window_params = [{transform_indices = @transform_0, window_bounds = array<i64: 2, 16, 24>}, {pipeline_mode = #tpu.pipeline_mode<synchronous>, transform_indices = @transform_1, window_bounds = array<i64: 24, 32>}, {pipeline_mode = #tpu.pipeline_mode<synchronous>, transform_indices = @transform_2, window_bounds = array<i64: 16, 32>}, {pipeline_mode = #tpu.pipeline_mode<synchronous>, transform_indices = @transform_3, window_bounds = array<i64: 16, 32>}, {pipeline_mode = #tpu.pipeline_mode<synchronous>, transform_indices = @transform_4, window_bounds = array<i64: 96, 32>}, {pipeline_mode = #tpu.pipeline_mode<synchronous>, transform_indices = @transform_5, window_bounds = array<i64: 16, 32>}, {pipeline_mode = #tpu.pipeline_mode<synchronous>, transform_indices = @transform_6, window_bounds = array<i64: 16, 32>}, {transform_indices = @transform_7, window_bounds = array<i64: 2, 16, 32>}]} {
    %c0 = arith.constant 0 : index
    %c0_0 = arith.constant 0 : index
    %c0_1 = arith.constant 0 : index
    %0 = vector.load %arg1[%c0, %c0_0, %c0_1] : memref<2x16x24xbf16, #tpu.memory_space<vmem>>, vector<2x16x24xbf16>
    %1 = vector.shape_cast %0 : vector<2x16x24xbf16> to vector<32x24xbf16>
    %c0_2 = arith.constant 0 : index
    %c0_3 = arith.constant 0 : index
    %2 = vector.load %arg2[%c0_2, %c0_3] : memref<24x32xbf16, #tpu.memory_space<vmem>>, vector<24x32xbf16>
    %cst = arith.constant dense<0.000000e+00> : vector<32x32xf32>
    %3 = tpu.matmul %1, %2, %cst {dimension_numbers = #tpu.dot_dimension_numbers<[1], [0], [0], [1], [0, 0, 1, 1], [], []>} : vector<32x24xbf16>, vector<24x32xbf16>, vector<32x32xf32> -> vector<32x32xf32>
    %4 = vector.shape_cast %3 : vector<32x32xf32> to vector<2x16x32xf32>
    %c0_4 = arith.constant 0 : index
    %c0_5 = arith.constant 0 : index
    %5 = vector.load %arg3[%c0_4, %c0_5] : memref<16x32xf32, #tpu.memory_space<vmem>>, vector<16x32xf32>
    %6 = vector.shape_cast %5 : vector<16x32xf32> to vector<1x16x32xf32>
    %7 = vector.broadcast %6 : vector<1x16x32xf32> to vector<2x16x32xf32>
    %8 = arith.mulf %4, %7 : vector<2x16x32xf32>
    %c0_6 = arith.constant 0 : index
    %c0_7 = arith.constant 0 : index
    %9 = vector.load %arg4[%c0_6, %c0_7] : memref<16x32xf32, #tpu.memory_space<vmem>>, vector<16x32xf32>
    %10 = vector.shape_cast %9 : vector<16x32xf32> to vector<1x16x32xf32>
    %11 = vector.broadcast %10 : vector<1x16x32xf32> to vector<2x16x32xf32>
    %12 = arith.addf %8, %11 : vector<2x16x32xf32>
    %cst_8 = arith.constant 0.000000e+00 : f32
    %13 = vector.broadcast %cst_8 : f32 to vector<2x16x32xf32>
    %14 = arith.cmpf oge, %12, %13 : vector<2x16x32xf32>
    %cst_9 = arith.constant 2.000000e-01 : f32
    %15 = vector.broadcast %cst_9 : f32 to vector<2x16x32xf32>
    %16 = arith.mulf %15, %12 : vector<2x16x32xf32>
    %17 = arith.select %14, %12, %16 : vector<2x16x32xi1>, vector<2x16x32xf32>
    %18 = arith.truncf %17 : vector<2x16x32xf32> to vector<2x16x32xbf16>
    %cst_10 = arith.constant 0.000000e+00 : bf16
    %19 = vector.broadcast %cst_10 : bf16 to vector<2x1x32xbf16>
    %20 = vector.extract_strided_slice %18 {offsets = [0, 0, 0], sizes = [2, 15, 32], strides = [1, 1, 1]} : vector<2x16x32xbf16> to vector<2x15x32xbf16>
    %21 = tpu.concatenate %19, %20 in 1 : vector<2x1x32xbf16>, vector<2x15x32xbf16> -> vector<2x16x32xbf16>
    %22 = vector.extract_strided_slice %18 {offsets = [0, 1, 0], sizes = [2, 15, 32], strides = [1, 1, 1]} : vector<2x16x32xbf16> to vector<2x15x32xbf16>
    %cst_11 = arith.constant 0.000000e+00 : bf16
    %23 = vector.broadcast %cst_11 : bf16 to vector<2x1x32xbf16>
    %24 = tpu.concatenate %22, %23 in 1 : vector<2x15x32xbf16>, vector<2x1x32xbf16> -> vector<2x16x32xbf16>
    %25 = tpu.concatenate %21, %18, %24 in 2 : vector<2x16x32xbf16>, vector<2x16x32xbf16>, vector<2x16x32xbf16> -> vector<2x16x96xbf16>
    %26 = vector.shape_cast %25 : vector<2x16x96xbf16> to vector<32x96xbf16>
    %c0_12 = arith.constant 0 : index
    %c0_13 = arith.constant 0 : index
    %27 = vector.load %arg5[%c0_12, %c0_13] : memref<96x32xbf16, #tpu.memory_space<vmem>>, vector<96x32xbf16>
    %cst_14 = arith.constant dense<0.000000e+00> : vector<32x32xf32>
    %28 = tpu.matmul %26, %27, %cst_14 {dimension_numbers = #tpu.dot_dimension_numbers<[1], [0], [0], [1], [0, 0, 1, 1], [], []>} : vector<32x96xbf16>, vector<96x32xbf16>, vector<32x32xf32> -> vector<32x32xf32>
    %29 = vector.shape_cast %28 : vector<32x32xf32> to vector<2x16x32xf32>
    %c0_15 = arith.constant 0 : index
    %c0_16 = arith.constant 0 : index
    %30 = vector.load %arg6[%c0_15, %c0_16] : memref<16x32xf32, #tpu.memory_space<vmem>>, vector<16x32xf32>
    %31 = vector.shape_cast %30 : vector<16x32xf32> to vector<1x16x32xf32>
    %32 = vector.broadcast %31 : vector<1x16x32xf32> to vector<2x16x32xf32>
    %33 = arith.mulf %29, %32 : vector<2x16x32xf32>
    %c0_17 = arith.constant 0 : index
    %c0_18 = arith.constant 0 : index
    %34 = vector.load %arg7[%c0_17, %c0_18] : memref<16x32xf32, #tpu.memory_space<vmem>>, vector<16x32xf32>
    %35 = vector.shape_cast %34 : vector<16x32xf32> to vector<1x16x32xf32>
    %36 = vector.broadcast %35 : vector<1x16x32xf32> to vector<2x16x32xf32>
    %37 = arith.addf %33, %36 : vector<2x16x32xf32>
    %cst_19 = arith.constant 0.000000e+00 : f32
    %38 = vector.broadcast %cst_19 : f32 to vector<2x16x32xf32>
    %39 = arith.cmpf oge, %37, %38 : vector<2x16x32xf32>
    %cst_20 = arith.constant 2.000000e-01 : f32
    %40 = vector.broadcast %cst_20 : f32 to vector<2x16x32xf32>
    %41 = arith.mulf %40, %37 : vector<2x16x32xf32>
    %42 = arith.select %39, %37, %41 : vector<2x16x32xi1>, vector<2x16x32xf32>
    %c0_21 = arith.constant 0 : index
    %c0_22 = arith.constant 0 : index
    %c0_23 = arith.constant 0 : index
    %43 = vector.load %arg8[%c0_21, %c0_22, %c0_23] : memref<2x16x32xf32, #tpu.memory_space<vmem>>, vector<2x16x32xf32>
    tpu.vector_store %arg8[%c0_21, %c0_22, %c0_23], %42 {strides = array<i32>} : memref<2x16x32xf32, #tpu.memory_space<vmem>>, vector<2x16x32xf32>,
    return
  }
  func.func @transform_0(%arg0: i32) -> (i32, i32, i32) {
    %c0_i32 = arith.constant 0 : i32
    %c0_i32_0 = arith.constant 0 : i32
    %c0_i32_1 = arith.constant 0 : i32
    return %arg0, %c0_i32, %c0_i32_0 : i32, i32, i32
  }
  func.func @transform_1(%arg0: i32) -> (i32, i32) {
    %c0_i32 = arith.constant 0 : i32
    %c0_i32_0 = arith.constant 0 : i32
    %c0_i32_1 = arith.constant 0 : i32
    return %c0_i32, %c0_i32_0 : i32, i32
  }
  func.func @transform_2(%arg0: i32) -> (i32, i32) {
    %c0_i32 = arith.constant 0 : i32
    %c0_i32_0 = arith.constant 0 : i32
    %c0_i32_1 = arith.constant 0 : i32
    return %c0_i32, %c0_i32_0 : i32, i32
  }
  func.func @transform_3(%arg0: i32) -> (i32, i32) {
    %c0_i32 = arith.constant 0 : i32
    %c0_i32_0 = arith.constant 0 : i32
    %c0_i32_1 = arith.constant 0 : i32
    return %c0_i32, %c0_i32_0 : i32, i32
  }
  func.func @transform_4(%arg0: i32) -> (i32, i32) {
    %c0_i32 = arith.constant 0 : i32
    %c0_i32_0 = arith.constant 0 : i32
    %c0_i32_1 = arith.constant 0 : i32
    return %c0_i32, %c0_i32_0 : i32, i32
  }
  func.func @transform_5(%arg0: i32) -> (i32, i32) {
    %c0_i32 = arith.constant 0 : i32
    %c0_i32_0 = arith.constant 0 : i32
    %c0_i32_1 = arith.constant 0 : i32
    return %c0_i32, %c0_i32_0 : i32, i32
  }
  func.func @transform_6(%arg0: i32) -> (i32, i32) {
    %c0_i32 = arith.constant 0 : i32
    %c0_i32_0 = arith.constant 0 : i32
    %c0_i32_1 = arith.constant 0 : i32
    return %c0_i32, %c0_i32_0 : i32, i32
  }
  func.func @transform_7(%arg0: i32) -> (i32, i32, i32) {
    %c0_i32 = arith.constant 0 : i32
    %c0_i32_0 = arith.constant 0 : i32
    %c0_i32_1 = arith.constant 0 : i32
    return %arg0, %c0_i32, %c0_i32_0 : i32, i32, i32
  }
}

</mosaic_0001>

<llo_original>
// kernel: block_forward.1
$region0: #{block_forward.1}
  #allocation0 [shape = 'u32[]', space=smem, size = 0x4, offset = 0x4, fixed_abs, tag = 'smem constant byte address 0x4 - core index']
  #allocation1 [shape = 'u32[144,128]{1,0:T(1,128)}', space=vmem, size = 0x12000, scoped, tag = 'internal scratch']
  %s0 = inlined_call_operand.vmem [shape: bf16[2,16,24], index: 0, kind: input, shape index: {}]
  %s1 = inlined_call_operand.vmem [shape: bf16[24,32], index: 1, kind: input, shape index: {}]
  %s2 = inlined_call_operand.vmem [shape: f32[16,32], index: 2, kind: input, shape index: {}]
  %s3 = inlined_call_operand.vmem [shape: f32[16,32], index: 3, kind: input, shape index: {}]
  %s4 = inlined_call_operand.vmem [shape: bf16[96,32], index: 4, kind: input, shape index: {}]
  %s5 = inlined_call_operand.vmem [shape: f32[16,32], index: 5, kind: input, shape index: {}]
  %s6 = inlined_call_operand.vmem [shape: f32[16,32], index: 6, kind: input, shape index: {}]
  %s7 = inlined_call_operand.hbm [shape: f32[2,16,32], index: 7, kind: output, shape index: {}]
  %s8 = sld [smem:[#allocation0]]
  $region38: #{block_forward.1} parent=0
    _
  %s10 = ssub.s32 1, %s8
  %s11 = scalar_select 0, %s10, %s8
  $region1: #{block_forward.1} parent=0
    #allocation2 [shape = 'u8[16384]{0}', space=vmem, size = 0x4000, scoped, tag = 'output window, operand 0, single buffered']
    #allocation3 [shape = 's32[1]{0}', space=sflag, size = 0x4, scoped, tag = 'scoped memory for block_forward.1']
    %12 = vsyncpa [#allocation3], 0
    // Predicated region
    $region2: #{block_forward.1} parent=1 // pred_check
      _
    $region3: #{block_forward.1} parent=1 // pred_check_branch
      %14 = sbr.rel (0) target = $region5
    $region4: #{block_forward.1} parent=1 // pred_region
      _
    $region5: #{block_forward.1} parent=1 // pred_fallthru
      _
    // Predicated region
    $region6: #{block_forward.1} parent=1 // pred_check
      _
    $region7: #{block_forward.1} parent=1 // pred_check_branch
      %16 = sbr.rel (0) target = $region9
    $region8: #{block_forward.1} parent=1 // pred_region
      _
    $region9: #{block_forward.1} parent=1 // pred_fallthru
      _
    // Predicated region
    $region10: #{block_forward.1} parent=1 // pred_check
      _
    $region11: #{block_forward.1} parent=1 // pred_check_branch
      %18 = sbr.rel (0) target = $region13
    $region12: #{block_forward.1} parent=1 // pred_region
      _
    $region13: #{block_forward.1} parent=1 // pred_fallthru
      _
    // Predicated region
    $region14: #{block_forward.1} parent=1 // pred_check
      _
    $region15: #{block_forward.1} parent=1 // pred_check_branch
      %20 = sbr.rel (0) target = $region17
    $region16: #{block_forward.1} parent=1 // pred_region
      _
    $region17: #{block_forward.1} parent=1 // pred_fallthru
      _
    // Predicated region
    $region18: #{block_forward.1} parent=1 // pred_check
      _
    $region19: #{block_forward.1} parent=1 // pred_check_branch
      %22 = sbr.rel (0) target = $region21
    $region20: #{block_forward.1} parent=1 // pred_region
      _
    $region21: #{block_forward.1} parent=1 // pred_fallthru
      _
    // Predicated region
    $region22: #{block_forward.1} parent=1 // pred_check
      _
    $region23: #{block_forward.1} parent=1 // pred_check_branch
      %24 = sbr.rel (0) target = $region25
    $region24: #{block_forward.1} parent=1 // pred_region
      _
    $region25: #{block_forward.1} parent=1 // pred_fallthru
      _
    // Predicated region
    $region26: #{block_forward.1} parent=1 // pred_check
      _
    $region27: #{block_forward.1} parent=1 // pred_check_branch
      %26 = sbr.rel (0) target = $region29
    $region28: #{block_forward.1} parent=1 // pred_region
      _
    $region29: #{block_forward.1} parent=1 // pred_fallthru
      _
    %v28 = vld [vmem:[%s0] sm:$0xf]
    %v29 = vld [vmem:[%s0 + $0x4] sm:$0xf]
    %v30 = vld [vmem:[%s0 + $0x8] sm:$0xf]
    %v31 = vld [vmem:[%s0 + $0xc] sm:$0xf]
    %v32 = vld [vmem:[%s1] sm:$0xf]
    %v33 = vld [vmem:[%s1 + $0x4] sm:$0xf]
    %v34 = vld [vmem:[%s1 + $0x8] sm:$0xf]
    %v39 = vunpack.c.l.b16 %v28
    %v40 = vunpack.c.l.b16 %v29
    %v41 = vunpack.c.l.b16 %v30
    %v42 = vunpack.c.l.b16 %v31
    %v43 = vpack.c.b16 %v40, %v39
    %v44 = vpack.c.b16 %v42, %v41
    %v48 = vunpack.c.l.b16 %v32
    %v49 = vunpack.c.l.b16 %v33
    %v50 = vunpack.c.l.b16 %v34
    %v51 = vpack.c.b16 %v49, %v48
    %v52 = vpack.c.b16 %v50, %v50
    %vm54 = vcmask 195584
    %v56 = vsel %vm54, %v43, 0
    %v59 = vsel %vm54, %v44, 0
    %vm61 = vcmask 1043456
    %v63 = vsel %vm61, %v52, 0
    %65 = vmatprep.subr.bf16.mxu0 0
    %66 = vmatpush1.bf16.msra.mxu0 %v51
    %67 = vmatprep.subr.bf16.mxu0 0
    %68 = vmatpush1.bf16.msra.mxu0 %v63
    %69 = vmatprep.subr.bf16.mxu0 0
    %70 = vmatpush1.bf16.msra.mxu0 0
    %71 = vmatprep.subr.bf16.mxu0 0
    %72 = vmatpush1.bf16.msra.mxu0 0
    %73 = vmatprep.subr.bf16.mxu0 0
    %74 = vmatpush1.bf16.msra.mxu0 0
    %75 = vmatprep.subr.bf16.mxu0 0
    %76 = vmatpush1.bf16.msra.mxu0 0
    %77 = vmatprep.subr.bf16.mxu0 0
    %78 = vmatpush1.bf16.msra.mxu0 0
    %79 = vmatprep.subr.bf16.mxu0 0
    %80 = vmatpush1.bf16.msra.mxu0 0
    %81 = vmatprep.subr.bf16.mxu0 0
    %82 = vmatpush1.bf16.msra.mxu0 0
    %83 = vmatprep.subr.bf16.mxu0 0
    %84 = vmatpush1.bf16.msra.mxu0 0
    %85 = vmatprep.subr.bf16.mxu0 0
    %86 = vmatpush1.bf16.msra.mxu0 0
    %87 = vmatprep.subr.bf16.mxu0 0
    %88 = vmatpush1.bf16.msra.mxu0 0
    %89 = vmatprep.subr.bf16.mxu0 0
    %90 = vmatpush1.bf16.msra.mxu0 0
    %91 = vmatprep.subr.bf16.mxu0 0
    %92 = vmatpush1.bf16.msra.mxu0 0
    %93 = vmatprep.subr.bf16.mxu0 0
    %94 = vmatpush1.bf16.msra.mxu0 0
    %95 = vmatprep.subr.bf16.mxu0 0
    %96 = vmatpush1.bf16.msra.mxu0 0
    %97 = vmatprep.mubr.bf16.mxu0 0
    %98 = vmatmul.mubr.bf16.gmra.mrb[0].mxu0 %v56
    %v99 = vpop.f32.mrb[0].mxu0
    %v100 = vadd.f32 0.0, %v99
    %v101 = vpop.f32.mrb[0].mxu0
    %v102 = vpop.f32.mrb[0].mxu0
    %v103 = vadd.f32 0.0, %v102
    %v104 = vpop.f32.mrb[0].mxu0
    %105 = vmatprep.mubr.bf16.mxu0 0
    %106 = vmatmul.mubr.bf16.gmra.mrb[0].mxu0 %v59
    %v107 = vpop.f32.mrb[0].mxu0
    %v108 = vadd.f32 0.0, %v107
    %v109 = vpop.f32.mrb[0].mxu0
    %v110 = vpop.f32.mrb[0].mxu0
    %v111 = vadd.f32 0.0, %v110
    %v112 = vpop.f32.mrb[0].mxu0
    %113 = vdwg.mxu0
    %v114 = vld [vmem:[%s2] sm:$0xff]
    %v115 = vld [vmem:[%s2 + $0x8] sm:$0xff]
    %v116 = vmul.f32 %v100, %v114
    %v117 = vmul.f32 %v103, %v115
    %v118 = vmul.f32 %v108, %v114
    %v119 = vmul.f32 %v111, %v115
    %v120 = vld [vmem:[%s3] sm:$0xff]
    %v121 = vld [vmem:[%s3 + $0x8] sm:$0xff]
    %v122 = vadd.f32 %v116, %v120
    %v123 = vadd.f32 %v117, %v121
    %v124 = vadd.f32 %v118, %v120
    %v125 = vadd.f32 %v119, %v121
    %vm126 = vcmp.ge.f32.partialorder %v122, 0.0
    %vm127 = vcmp.ge.f32.partialorder %v123, 0.0
    %vm128 = vcmp.ge.f32.partialorder %v124, 0.0
    %vm129 = vcmp.ge.f32.partialorder %v125, 0.0
    %v130 = vmul.f32 %v122, 0.2
    %v131 = vmul.f32 %v123, 0.2
    %v132 = vmul.f32 %v124, 0.2
    %v133 = vmul.f32 %v125, 0.2
    %v134 = vsel %vm126, %v122, %v130
    %v135 = vsel %vm127, %v123, %v131
    %v136 = vsel %vm128, %v124, %v132
    %v137 = vsel %vm129, %v125, %v133
    %v138 = vpack.c.bf16 %v135, %v134
    %v139 = vpack.c.bf16 %v137, %v136
    %v141 = vshrl.u32 %v138, 16
    %v143 = vrot.slane %v141, 7
    %v144 = vshll.u32 %v138, 16
    %v146 = vor.u32 %v143, %v144
    %v148 = vshrl.u32 %v139, 16
    %v150 = vrot.slane %v148, 7
    %v151 = vshll.u32 %v139, 16
    %v153 = vor.u32 %v150, %v151
    %vm156 = vcmask 1040384
    %vm157 = vsmask.f32 256
    %vm158 = vmand %vm156, %vm157
    %v159 = vsel %vm158, 0, %v146
    %v160 = vsel %vm158, 0, %v153
    %v161 = vrot.slane %v144, 1
    %v162 = vor.u32 %v141, %v161
    %v163 = vrot.slane %v151, 1
    %v164 = vor.u32 %v148, %v163
    %vm167 = vcmask 1047552
    %vm168 = vsmask.f32 7424
    %vm169 = vmand %vm167, %vm168
    %v170 = vsel %vm169, %v162, 0
    %v171 = vsel %vm169, %v164, 0
    %174 = vrot.lane.b32.xlu0 %v138, 32
    %v175 = vpop.permute.xlu0 %174
    %176 = vrot.lane.b32.xlu0 %v139, 32
    %v177 = vpop.permute.xlu0 %176
    %180 = vrot.lane.b32.xlu0 %v170, 64
    %v181 = vpop.permute.xlu0 %180
    %182 = vrot.lane.b32.xlu0 %v171, 64
    %v183 = vpop.permute.xlu0 %182
    %vm184 = vcmask 261120
    %v187 = vsel %vm184, %v159, %v175
    %v190 = vsel %vm184, %v160, %v177
    %vm191 = vcmask 523264
    %v193 = vsel %vm191, %v187, %v181
    %v195 = vsel %vm191, %v190, %v183
    %v196 = vld [vmem:[%s4] sm:$0xf]
    %v197 = vld [vmem:[%s4 + $0x4] sm:$0xf]
    %v198 = vld [vmem:[%s4 + $0x8] sm:$0xf]
    %v199 = vld [vmem:[%s4 + $0xc] sm:$0xf]
    %v200 = vld [vmem:[%s4 + $0x10] sm:$0xf]
    %v201 = vld [vmem:[%s4 + $0x14] sm:$0xf]
    %v202 = vld [vmem:[%s4 + $0x18] sm:$0xf]
    %v203 = vld [vmem:[%s4 + $0x1c] sm:$0xf]
    %v204 = vld [vmem:[%s4 + $0x20] sm:$0xf]
    %v205 = vld [vmem:[%s4 + $0x24] sm:$0xf]
    %v206 = vld [vmem:[%s4 + $0x28] sm:$0xf]
    %v207 = vld [vmem:[%s4 + $0x2c] sm:$0xf]
    %v220 = vunpack.c.l.b16 %v196
    %v221 = vunpack.c.l.b16 %v197
    %v222 = vunpack.c.l.b16 %v198
    %v223 = vunpack.c.l.b16 %v199
    %v224 = vunpack.c.l.b16 %v200
    %v225 = vunpack.c.l.b16 %v201
    %v226 = vunpack.c.l.b16 %v202
    %v227 = vunpack.c.l.b16 %v203
    %v228 = vunpack.c.l.b16 %v204
    %v229 = vunpack.c.l.b16 %v205
    %v230 = vunpack.c.l.b16 %v206
    %v231 = vunpack.c.l.b16 %v207
    %v232 = vpack.c.b16 %v221, %v220
    %v233 = vpack.c.b16 %v223, %v222
    %v234 = vpack.c.b16 %v225, %v224
    %v235 = vpack.c.b16 %v227, %v226
    %v236 = vpack.c.b16 %v229, %v228
    %v237 = vpack.c.b16 %v231, %v230
    %vm244 = vcmask 785408
    %v245 = vsel %vm244, %v193, 0
    %v247 = vsel %vm244, %v195, 0
    %249 = vmatprep.subr.bf16.mxu0 0
    %250 = vmatpush1.bf16.msra.mxu0 %v232
    %251 = vmatprep.subr.bf16.mxu0 0
    %252 = vmatpush1.bf16.msra.mxu0 %v233
    %253 = vmatprep.subr.bf16.mxu0 0
    %254 = vmatpush1.bf16.msra.mxu0 %v234
    %255 = vmatprep.subr.bf16.mxu0 0
    %256 = vmatpush1.bf16.msra.mxu0 %v235
    %257 = vmatprep.subr.bf16.mxu0 0
    %258 = vmatpush1.bf16.msra.mxu0 %v236
    %259 = vmatprep.subr.bf16.mxu0 0
    %260 = vmatpush1.bf16.msra.mxu0 %v237
    %261 = vmatprep.subr.bf16.mxu0 0
    %262 = vmatpush1.bf16.msra.mxu0 0
    %263 = vmatprep.subr.bf16.mxu0 0
    %264 = vmatpush1.bf16.msra.mxu0 0
    %265 = vmatprep.subr.bf16.mxu0 0
    %266 = vmatpush1.bf16.msra.mxu0 0
    %267 = vmatprep.subr.bf16.mxu0 0
    %268 = vmatpush1.bf16.msra.mxu0 0
    %269 = vmatprep.subr.bf16.mxu0 0
    %270 = vmatpush1.bf16.msra.mxu0 0
    %271 = vmatprep.subr.bf16.mxu0 0
    %272 = vmatpush1.bf16.msra.mxu0 0
    %273 = vmatprep.subr.bf16.mxu0 0
    %274 = vmatpush1.bf16.msra.mxu0 0
    %275 = vmatprep.subr.bf16.mxu0 0
    %276 = vmatpush1.bf16.msra.mxu0 0
    %277 = vmatprep.subr.bf16.mxu0 0
    %278 = vmatpush1.bf16.msra.mxu0 0
    %279 = vmatprep.subr.bf16.mxu0 0
    %280 = vmatpush1.bf16.msra.mxu0 0
    %281 = vmatprep.mubr.bf16.mxu0 0
    %282 = vmatmul.mubr.bf16.gmra.mrb[0].mxu0 %v245
    %v283 = vpop.f32.mrb[0].mxu0
    %v284 = vadd.f32 0.0, %v283
    %v285 = vpop.f32.mrb[0].mxu0
    %v286 = vpop.f32.mrb[0].mxu0
    %v287 = vadd.f32 0.0, %v286
    %v288 = vpop.f32.mrb[0].mxu0
    %289 = vmatprep.mubr.bf16.mxu0 0
    %290 = vmatmul.mubr.bf16.gmra.mrb[0].mxu0 %v247
    %v291 = vpop.f32.mrb[0].mxu0
    %v292 = vadd.f32 0.0, %v291
    %v293 = vpop.f32.mrb[0].mxu0
    %v294 = vpop.f32.mrb[0].mxu0
    %v295 = vadd.f32 0.0, %v294
    %v296 = vpop.f32.mrb[0].mxu0
    %297 = vdwg.mxu0
    %v298 = vld [vmem:[%s5] sm:$0xff]
    %v299 = vld [vmem:[%s5 + $0x8] sm:$0xff]
    %v300 = vmul.f32 %v284, %v298
    %v301 = vmul.f32 %v287, %v299
    %v302 = vmul.f32 %v292, %v298
    %v303 = vmul.f32 %v295, %v299
    %v304 = vld [vmem:[%s6] sm:$0xff]
    %v305 = vld [vmem:[%s6 + $0x8] sm:$0xff]
    %v306 = vadd.f32 %v300, %v304
    %v307 = vadd.f32 %v301, %v305
    %v308 = vadd.f32 %v302, %v304
    %v309 = vadd.f32 %v303, %v305
    %vm310 = vcmp.ge.f32.partialorder %v306, 0.0
    %vm311 = vcmp.ge.f32.partialorder %v307, 0.0
    %vm312 = vcmp.ge.f32.partialorder %v308, 0.0
    %vm313 = vcmp.ge.f32.partialorder %v309, 0.0
    %v314 = vmul.f32 %v306, 0.2
    %v315 = vmul.f32 %v307, 0.2
    %v316 = vmul.f32 %v308, 0.2
    %v317 = vmul.f32 %v309, 0.2
    %v318 = vsel %vm310, %v306, %v314
    %v319 = vsel %vm311, %v307, %v315
    %v320 = vsel %vm312, %v308, %v316
    %v321 = vsel %vm313, %v309, %v317
    %322 = vst.msk [vmem:[#allocation2] sm:$0xff] %vm184, %v318
    %323 = vst.msk [vmem:[#allocation2 + $0x8] sm:$0xff] %vm184, %v319
    %324 = vst.msk [vmem:[#allocation2 + $0x10] sm:$0xff] %vm184, %v320
    %325 = vst.msk [vmem:[#allocation2 + $0x18] sm:$0xff] %vm184, %v321
    // Predicated region
    $region30: #{block_forward.1} parent=1 // pred_check
      _
    $region31: #{block_forward.1} parent=1 // pred_check_branch
      %327 = sbr.rel (0) target = $region33
    $region32: #{block_forward.1} parent=1 // pred_region
      %s329 = ssub.s32 512, 512
      %330 = vsyncadd [#allocation3], %s329
      %s331 = sshll.u32 [#allocation2], 4
      %s332 = int_to_ptr.vmem [resolvable:$true] %s331
      %337 = dma.vmem_to_hbm [thread:$0]  %s332, 512, %s7, [#allocation3], 128, 128, 8
    $region33: #{block_forward.1} parent=1 // pred_fallthru
      _
    // Predicated region
    $region34: #{block_forward.1} parent=1 // pred_check
      _
    $region35: #{block_forward.1} parent=1 // pred_check_branch
      %339 = sbr.rel (0) target = $region37
    $region36: #{block_forward.1} parent=1 // pred_region
      %340 = dma.done [#allocation3], 512
    $region37: #{block_forward.1} parent=1 // pred_fallthru
      _
    %341 = vsyncpa [#allocation3], 1

</llo_original>
